<compile_context>
chip_gen: v7x
topology: tpu7x:2x2x1
jax: 0.10.0
libtpu: 0.0.40
codegen_flags: <defaults>
</compile_context>

<pallas_src>
import jax
import jax.numpy as jnp
from jax import lax
from jax.experimental import pallas as pl
from jax.experimental.pallas import tpu as pltpu

KS = 3          # conv kernel size
PAD = 1         # conv padding
LANE = 128      # TPU lane width
SUBLANE = 8     # f32 sublane width


def _round_up(v, m):
    return -(-v // m) * m


def _res_block_kernel(x_ref, lh_ref, rh_ref, w_ref, b_ref, o_ref):
    # x_ref : (1, C, TL)    f32 input tile (conv source AND residual)
    # lh_ref: (1, 1, C, 1)  f32 left-halo column  x[:, tile_start - 1] (0 at seq start)
    # rh_ref: (1, 1, C, 1)  f32 right-halo column x[:, tile_end]       (0 at seq end)
    # w_ref : (C, 3C)       bf16 fused conv weight  [tap0 | tap1 | tap2]
    # b_ref : (C, 1)        f32 conv bias
    # o_ref : (1, C, TL)
    x = x_ref[0]                                        # (C, TL) f32
    tl = x.shape[-1]
    lane = lax.broadcasted_iota(jnp.int32, x.shape, 1)

    # Shifted views of the tile (XLU roll, non-negative shifts only); patch the
    # wrapped edge column with the neighbor-tile halo so boundary outputs are exact.
    x_prev = jnp.where(lane == 0, lh_ref[0, 0], pltpu.roll(x, shift=1, axis=1))
    x_next = jnp.where(lane == tl - 1, rh_ref[0, 0],
                       pltpu.roll(x, shift=tl - 1, axis=1))

    # Small im2col: (3C, TL) f32, single cast to bf16, then ONE MXU matmul with
    # f32 accumulation.
    stacked = jnp.concatenate([x_prev, x, x_next], axis=0).astype(jnp.bfloat16)
    conv = jnp.dot(w_ref[...], stacked, preferred_element_type=jnp.float32)

    y = x + conv + b_ref[...]                           # residual + bias (f32)
    o_ref[0] = jnp.maximum(y, 0.0).astype(o_ref.dtype)  # ReLU


def res_block_1d(x, weight, bias, *, tl_target=1024,
                 vmem_budget_bytes=24 * 1024 * 1024):
    """x: (B, C, L); weight: (C_out, C_in, 3); bias: (C_out,). Returns (B, C, L)."""
    B, C, L = x.shape
    C_out, C_in, ks = weight.shape
    assert ks == KS and C_out == C and C_in == C, "res_block_1D needs dim_in==dim_out, ks=3"

    # --- shape plumbing: sublane-align C, lane-dense tile TL along L ----------
    Cp = _round_up(C, SUBLANE)
    L128 = _round_up(L, LANE)
    # budget: 2 (in+out) x 2 (double-buffer) x Cp x TL x 4B  <= vmem_budget_bytes
    tl_cap = max(LANE, (vmem_budget_bytes // (16 * Cp)) // LANE * LANE)
    TL = min(L128, tl_target, tl_cap)
    Lp = _round_up(L, TL)
    nT = Lp // TL

    xp = x
    if (Cp, Lp) != (C, L):
        # zero-padding on the right edge of L matches the conv's zero padding;
        # padded rows/cols are sliced away from the output.
        xp = jnp.pad(x, ((0, 0), (0, Cp - C), (0, Lp - L)))

    # --- per-tile halo columns (tiny: (B, nT, Cp, 1)) -------------------------
    zcol = jnp.zeros((B, Cp, 1), xp.dtype)
    if nT > 1:
        lh = jnp.concatenate([zcol, xp[:, :, TL - 1::TL][:, :, : nT - 1]], axis=-1)
        rh = jnp.concatenate([xp[:, :, TL::TL], zcol], axis=-1)
    else:
        lh = zcol
        rh = zcol
    lh = jnp.transpose(lh, (0, 2, 1))[:, :, :, None]    # (B, nT, Cp, 1)
    rh = jnp.transpose(rh, (0, 2, 1))[:, :, :, None]

    # --- fused tap-major weight (C, 3C) in bf16, bias column in f32 ----------
    wp, bp = weight, bias
    if Cp != C:
        wp = jnp.pad(weight, ((0, Cp - C), (0, Cp - C), (0, 0)))
        bp = jnp.pad(bias, ((0, Cp - C),))
    w_fused = jnp.transpose(wp, (0, 2, 1)).reshape(Cp, KS * Cp).astype(jnp.bfloat16)
    b_col = bp.reshape(Cp, 1).astype(jnp.float32)

    out = pl.pallas_call(
        _res_block_kernel,
        out_shape=jax.ShapeDtypeStruct((B, Cp, Lp), x.dtype),
        grid_spec=pltpu.PrefetchScalarGridSpec(
            num_scalar_prefetch=0,
            grid=(B, nT),
            in_specs=[
                pl.BlockSpec((1, Cp, TL), lambda b, t: (b, 0, t)),
                pl.BlockSpec((1, 1, Cp, 1), lambda b, t: (b, t, 0, 0)),
                pl.BlockSpec((1, 1, Cp, 1), lambda b, t: (b, t, 0, 0)),
                pl.BlockSpec((Cp, KS * Cp), lambda b, t: (0, 0)),
                pl.BlockSpec((Cp, 1), lambda b, t: (0, 0)),
            ],
            out_specs=pl.BlockSpec((1, Cp, TL), lambda b, t: (b, 0, t)),
        ),
        compiler_params=pltpu.CompilerParams(
            dimension_semantics=("parallel", "parallel"),
            vmem_limit_bytes=48 * 1024 * 1024,
        ),
    )(xp, lh, rh, w_fused, b_col)

    return out[:, :C, :L]


def _reference(x, weight, bias):
    # pure-JAX f32 reference of the PyTorch forward
    x_pad = jnp.pad(x, ((0, 0), (0, 0), (PAD, PAD)))
    L = x.shape[-1]
    conv = bias[None, :, None]
    for k in range(KS):
        conv = conv + jnp.einsum("oi,bil->bol", weight[:, :, k], x_pad[:, :, k:k + L])
    return jnp.maximum(x + conv, 0.0)


if __name__ == "__main__":
    key = jax.random.PRNGKey(0)
    B, C, L = 2, 8, 16        # dim_in == dim_out == 8, spatial length 16

    kx, kw, kb = jax.random.split(key, 3)
    x = jax.random.normal(kx, (B, C, L), dtype=jnp.float32)
    fan_in = C * KS
    weight = jax.random.normal(kw, (C, C, KS), dtype=jnp.float32) / jnp.sqrt(fan_in)
    bias = jax.random.normal(kb, (C,), dtype=jnp.float32) * 0.1

    out = res_block_1d(x, weight, bias)
    out = jax.block_until_ready(out)

    ref = _reference(x, weight, bias)
    # bf16 MXU operands with f32 accumulation -> loosened tolerance vs f32 reference.
    assert out.shape == ref.shape, "shape mismatch"
    assert jnp.allclose(out, ref, atol=5e-2, rtol=5e-2), "mismatch vs reference"
    print("KERNEL_OK")
</pallas_src>

<mosaic_0001>
module attributes {stable_mosaic.version = 11 : i64} {
  func.func @_res_block_kernel(%arg0: i32, %arg1: i32, %arg2: memref<1x8x128xf32, #tpu.memory_space<vmem>>, %arg3: memref<1x1x8x1xf32, #tpu.memory_space<vmem>>, %arg4: memref<1x1x8x1xf32, #tpu.memory_space<vmem>>, %arg5: memref<8x24xbf16, #tpu.memory_space<vmem>>, %arg6: memref<8x1xf32, #tpu.memory_space<vmem>>, %arg7: memref<1x8x128xf32, #tpu.memory_space<vmem>>) attributes {dimension_semantics = [#tpu.dimension_semantics<parallel>, #tpu.dimension_semantics<parallel>], iteration_bounds = array<i64: 2, 1>, scalar_prefetch = 0 : i64, scratch_operands = 0 : i64, tpu.core_type = #tpu.core_type<tc>, window_params = [{transform_indices = @transform_0, window_bounds = array<i64: 1, 8, 128>}, {transform_indices = @transform_1, window_bounds = array<i64: 1, 1, 8, 1>}, {transform_indices = @transform_2, window_bounds = array<i64: 1, 1, 8, 1>}, {pipeline_mode = #tpu.pipeline_mode<synchronous>, transform_indices = @transform_3, window_bounds = array<i64: 8, 24>}, {pipeline_mode = #tpu.pipeline_mode<synchronous>, transform_indices = @transform_4, window_bounds = array<i64: 8, 1>}, {transform_indices = @transform_5, window_bounds = array<i64: 1, 8, 128>}]} {
    %c0 = arith.constant 0 : index
    %c0_0 = arith.constant 0 : index
    %c0_1 = arith.constant 0 : index
    %0 = vector.load %arg2[%c0, %c0_0, %c0_1] : memref<1x8x128xf32, #tpu.memory_space<vmem>>, vector<1x8x128xf32>
    %1 = vector.shape_cast %0 : vector<1x8x128xf32> to vector<8x128xf32>
    %2 = tpu.iota {dimensions = array<i32: 1>} : vector<8x128xi32>
    %c0_i32 = arith.constant 0 : i32
    %3 = vector.broadcast %c0_i32 : i32 to vector<8x128xi32>
    %4 = arith.cmpi eq, %2, %3 : vector<8x128xi32>
    %c0_2 = arith.constant 0 : index
    %c0_3 = arith.constant 0 : index
    %c0_4 = arith.constant 0 : index
    %c0_5 = arith.constant 0 : index
    %5 = vector.load %arg3[%c0_2, %c0_3, %c0_4, %c0_5] : memref<1x1x8x1xf32, #tpu.memory_space<vmem>>, vector<1x1x8x1xf32>
    %6 = vector.shape_cast %5 : vector<1x1x8x1xf32> to vector<8x1xf32>
    %c1_i32 = arith.constant 1 : i32
    %7 = tpu.dynamic_rotate %1 by %c1_i32 dim 1 : vector<8x128xf32>, i32 -> vector<8x128xf32>
    %8 = vector.shape_cast %6 : vector<8x1xf32> to vector<8x1xf32>
    %9 = vector.broadcast %8 : vector<8x1xf32> to vector<8x128xf32>
    %10 = arith.select %4, %9, %7 : vector<8x128xi1>, vector<8x128xf32>
    %c127_i32 = arith.constant 127 : i32
    %11 = vector.broadcast %c127_i32 : i32 to vector<8x128xi32>
    %12 = arith.cmpi eq, %2, %11 : vector<8x128xi32>
    %c0_6 = arith.constant 0 : index
    %c0_7 = arith.constant 0 : index
    %c0_8 = arith.constant 0 : index
    %c0_9 = arith.constant 0 : index
    %13 = vector.load %arg4[%c0_6, %c0_7, %c0_8, %c0_9] : memref<1x1x8x1xf32, #tpu.memory_space<vmem>>, vector<1x1x8x1xf32>
    %14 = vector.shape_cast %13 : vector<1x1x8x1xf32> to vector<8x1xf32>
    %c127_i32_10 = arith.constant 127 : i32
    %15 = tpu.dynamic_rotate %1 by %c127_i32_10 dim 1 : vector<8x128xf32>, i32 -> vector<8x128xf32>
    %16 = vector.shape_cast %14 : vector<8x1xf32> to vector<8x1xf32>
    %17 = vector.broadcast %16 : vector<8x1xf32> to vector<8x128xf32>
    %18 = arith.select %12, %17, %15 : vector<8x128xi1>, vector<8x128xf32>
    %19 = tpu.concatenate %10, %1, %18 in 0 : vector<8x128xf32>, vector<8x128xf32>, vector<8x128xf32> -> vector<24x128xf32>
    %20 = arith.truncf %19 : vector<24x128xf32> to vector<24x128xbf16>
    %c0_11 = arith.constant 0 : index
    %c0_12 = arith.constant 0 : index
    %21 = vector.load %arg5[%c0_11, %c0_12] : memref<8x24xbf16, #tpu.memory_space<vmem>>, vector<8x24xbf16>
    %cst = arith.constant dense<0.000000e+00> : vector<8x128xf32>
    %22 = tpu.matmul %21, %20, %cst {dimension_numbers = #tpu.dot_dimension_numbers<[1], [0], [0], [1], [0, 0, 1, 1], [], []>} : vector<8x24xbf16>, vector<24x128xbf16>, vector<8x128xf32> -> vector<8x128xf32>
    %23 = arith.addf %1, %22 : vector<8x128xf32>
    %c0_13 = arith.constant 0 : index
    %c0_14 = arith.constant 0 : index
    %24 = vector.load %arg6[%c0_13, %c0_14] : memref<8x1xf32, #tpu.memory_space<vmem>>, vector<8x1xf32>
    %25 = vector.broadcast %24 : vector<8x1xf32> to vector<8x128xf32>
    %26 = arith.addf %23, %25 : vector<8x128xf32>
    %cst_15 = arith.constant 0.000000e+00 : f32
    %27 = vector.broadcast %cst_15 : f32 to vector<8x128xf32>
    %28 = arith.maximumf %26, %27 : vector<8x128xf32>
    %c0_16 = arith.constant 0 : index
    %c0_17 = arith.constant 0 : index
    %c0_18 = arith.constant 0 : index
    %29 = vector.load %arg7[%c0_16, %c0_17, %c0_18] : memref<1x8x128xf32, #tpu.memory_space<vmem>>, vector<1x8x128xf32>
    %30 = vector.shape_cast %29 : vector<1x8x128xf32> to vector<8x128xf32>
    %31 = vector.shape_cast %28 : vector<8x128xf32> to vector<1x8x128xf32>
    tpu.vector_store %arg7[%c0_16, %c0_17, %c0_18], %31 {strides = array<i32>} : memref<1x8x128xf32, #tpu.memory_space<vmem>>, vector<1x8x128xf32>,
    return
  }
  func.func @transform_0(%arg0: i32, %arg1: i32) -> (i32, i32, i32) {
    %c0_i32 = arith.constant 0 : i32
    %c0_i32_0 = arith.constant 0 : i32
    return %arg0, %c0_i32, %arg1 : i32, i32, i32
  }
  func.func @transform_1(%arg0: i32, %arg1: i32) -> (i32, i32, i32, i32) {
    %c0_i32 = arith.constant 0 : i32
    %c0_i32_0 = arith.constant 0 : i32
    %c0_i32_1 = arith.constant 0 : i32
    return %arg0, %arg1, %c0_i32, %c0_i32_0 : i32, i32, i32, i32
  }
  func.func @transform_2(%arg0: i32, %arg1: i32) -> (i32, i32, i32, i32) {
    %c0_i32 = arith.constant 0 : i32
    %c0_i32_0 = arith.constant 0 : i32
    %c0_i32_1 = arith.constant 0 : i32
    return %arg0, %arg1, %c0_i32, %c0_i32_0 : i32, i32, i32, i32
  }
  func.func @transform_3(%arg0: i32, %arg1: i32) -> (i32, i32) {
    %c0_i32 = arith.constant 0 : i32
    %c0_i32_0 = arith.constant 0 : i32
    %c0_i32_1 = arith.constant 0 : i32
    return %c0_i32, %c0_i32_0 : i32, i32
  }
  func.func @transform_4(%arg0: i32, %arg1: i32) -> (i32, i32) {
    %c0_i32 = arith.constant 0 : i32
    %c0_i32_0 = arith.constant 0 : i32
    %c0_i32_1 = arith.constant 0 : i32
    return %c0_i32, %c0_i32_0 : i32, i32
  }
  func.func @transform_5(%arg0: i32, %arg1: i32) -> (i32, i32, i32) {
    %c0_i32 = arith.constant 0 : i32
    %c0_i32_0 = arith.constant 0 : i32
    return %arg0, %c0_i32, %arg1 : i32, i32, i32
  }
}

</mosaic_0001>

<llo_original>
// kernel: tpu_custom_call.1
$region0: #{tpu_custom_call.1}
  #allocation0 [shape = 'u32[]', space=smem, size = 0x4, offset = 0x4, fixed_abs, tag = 'smem constant byte address 0x4 - core index']
  #allocation1 [shape = 'u32[144,128]{1,0:T(1,128)}', space=vmem, size = 0x12000, scoped, tag = 'internal scratch']
  %s0 = inlined_call_operand.vmem [shape: f32[2,8,128], index: 0, kind: input, shape index: {}]
  %s1 = inlined_call_operand.vmem [shape: f32[2,1,8,1], index: 1, kind: input, shape index: {}]
  %s2 = inlined_call_operand.vmem [shape: f32[2,1,8,1], index: 2, kind: input, shape index: {}]
  %s3 = inlined_call_operand.vmem [shape: bf16[8,24], index: 3, kind: input, shape index: {}]
  %s4 = inlined_call_operand.vmem [shape: f32[8,1], index: 4, kind: input, shape index: {}]
  %s5 = inlined_call_operand.hbm [shape: f32[2,8,128], index: 5, kind: output, shape index: {}]
  %s6 = sld [smem:[#allocation0]]
  $region53: #{tpu_custom_call.1} parent=0
    _
  %s8 = ssub.s32 1, %s6
  %s9 = scalar_select 0, %s8, %s6
  $region1: #{tpu_custom_call.1} parent=0
    #allocation2 [shape = 'u8[8192]{0}', space=vmem, size = 0x2000, scoped, tag = 'output window, operand 0']
    #allocation3 [shape = 's32[2]{0}', space=sflag, size = 0x8, scoped, tag = 'scoped memory for tpu_custom_call.1']
    %10 = vsyncpa [#allocation3], 0
    %s11 = scalar_lea.sflag [#allocation3], 1
    %12 = vsyncpa %s11, 0
    loop: start=0, step=1, limit=4
    $region2: #{tpu_custom_call.1} parent=1 // loop_pre_header
      _
    $region3: #{tpu_custom_call.1} parent=1 // loop_header
      %s14 = sphi 0, %s18
      %p15 = scmp.ge.s32.totalorder %s14, 4
      %s21 = sphi 0, %s33
      %s22 = sphi 0, %s29
      %s23 = sphi 0, %s21
      %s24 = sphi 0, %s22
      %s25 = sphi 0, %s23
      %s26 = sphi 0, %s24
      %s38 = sphi 0, %s40
      %s41 = sphi 0, %s38
      %s42 = sphi 0, %s41
      %s58 = sphi 0, %s42
      %s66 = sphi 0, %s68
      %s69 = sphi 0, %s66
      %s70 = sphi 0, %s69
      %s86 = sphi 0, %s70
      %s94 = sphi 0, %s96
      %s97 = sphi 0, %s94
      %s98 = sphi 0, %s97
      %s114 = sphi 0, %s98
      %s118 = sphi 0, %s118
      %s120 = sphi 0, %s118
      %s121 = sphi 0, %s120
      %s135 = sphi 0, %s121
      %s139 = sphi 0, %s139
      %s141 = sphi 0, %s139
      %s142 = sphi 0, %s141
      %s156 = sphi 0, %s142
      %s164 = sphi 0, %s166
      %s167 = sphi 0, %s164
      %s168 = sphi 0, %s167
      %s184 = sphi 0, %s168
    $region4: #{tpu_custom_call.1} parent=1 // loop_header_branch
      %17 = sbr.rel (%p15) target = $region8
    $region5: #{tpu_custom_call.1} parent=1 // loop_body
      %s19 = ssub.s32 %s14, 1
      %s20 = ssub.s32 %s14, 2
      %s27 = sadd.s32 1, %s22
      %p28 = scmp.ge.s32.totalorder %s27, 1
      %s29 = scalar_select %p28, 0, %s27
      %s30 = sadd.s32 1, %s21
      %s31 = scalar_select %p28, %s30, %s21
      %p32 = scmp.ge.s32.totalorder %s31, 2
      %s33 = scalar_select %p32, 0, %s31
      %s34 = ssub.s32 %s21, %s33
      %s35 = ssub.s32 %s22, %s29
      %s36 = sor.u32 %s34, %s35
      %p37 = scmp.eq.s32.totalorder %s36, 0
      %s39 = sadd.s32 %s38, 1
      %s40 = scalar_select %p37, %s38, %s39
      %p43 = pneg %p37
      %p44 = scmp.eq.s32.totalorder %s14, 1
      %p45 = por %p43, %p44
      %p46 = scmp.ne.s32.totalorder %s38, %s41
      %p47 = scmp.eq.s32.totalorder %s14, 0
      %p48 = por %p46, %p47
      %p49 = scmp.ne.s32.totalorder %s38, %s41
      %p50 = scmp.eq.s32.totalorder %s19, 1
      %p51 = por %p49, %p50
      %p52 = scmp.ne.s32.totalorder %s41, %s42
      %p53 = scmp.eq.s32.totalorder %s19, 0
      %p54 = por %p52, %p53
      %p55 = scmp.ne.s32.totalorder %s41, %s42
      %p56 = scmp.eq.s32.totalorder %s20, 1
      %p57 = por %p55, %p56
      %p59 = scmp.ne.s32.totalorder %s42, %s58
      %p60 = scmp.eq.s32.totalorder %s20, 0
      %p61 = por %p59, %p60
      %s62 = ssub.s32 %s21, %s33
      %s63 = ssub.s32 %s22, %s29
      %s64 = sor.u32 %s62, %s63
      %p65 = scmp.eq.s32.totalorder %s64, 0
      %s67 = sadd.s32 %s66, 1
      %s68 = scalar_select %p65, %s66, %s67
      %p71 = pneg %p65
      %p72 = scmp.eq.s32.totalorder %s14, 1
      %p73 = por %p71, %p72
      %p74 = scmp.ne.s32.totalorder %s66, %s69
      %p75 = scmp.eq.s32.totalorder %s14, 0
      %p76 = por %p74, %p75
      %p77 = scmp.ne.s32.totalorder %s66, %s69
      %p78 = scmp.eq.s32.totalorder %s19, 1
      %p79 = por %p77, %p78
      %p80 = scmp.ne.s32.totalorder %s69, %s70
      %p81 = scmp.eq.s32.totalorder %s19, 0
      %p82 = por %p80, %p81
      %p83 = scmp.ne.s32.totalorder %s69, %s70
      %p84 = scmp.eq.s32.totalorder %s20, 1
      %p85 = por %p83, %p84
      %p87 = scmp.ne.s32.totalorder %s70, %s86
      %p88 = scmp.eq.s32.totalorder %s20, 0
      %p89 = por %p87, %p88
      %s90 = ssub.s32 %s21, %s33
      %s91 = ssub.s32 %s22, %s29
      %s92 = sor.u32 %s90, %s91
      %p93 = scmp.eq.s32.totalorder %s92, 0
      %s95 = sadd.s32 %s94, 1
      %s96 = scalar_select %p93, %s94, %s95
      %p99 = pneg %p93
      %p100 = scmp.eq.s32.totalorder %s14, 1
      %p101 = por %p99, %p100
      %p102 = scmp.ne.s32.totalorder %s94, %s97
      %p103 = scmp.eq.s32.totalorder %s14, 0
      %p104 = por %p102, %p103
      %p105 = scmp.ne.s32.totalorder %s94, %s97
      %p106 = scmp.eq.s32.totalorder %s19, 1
      %p107 = por %p105, %p106
      %p108 = scmp.ne.s32.totalorder %s97, %s98
      %p109 = scmp.eq.s32.totalorder %s19, 0
      %p110 = por %p108, %p109
      %p111 = scmp.ne.s32.totalorder %s97, %s98
      %p112 = scmp.eq.s32.totalorder %s20, 1
      %p113 = por %p111, %p112
      %p115 = scmp.ne.s32.totalorder %s98, %s114
      %p116 = scmp.eq.s32.totalorder %s20, 0
      %p117 = por %p115, %p116
      %s119 = sadd.s32 %s118, 1
      %p122 = scmp.eq.s32.totalorder %s14, 1
      %p123 = scmp.ne.s32.totalorder %s118, %s120
      %p124 = scmp.eq.s32.totalorder %s14, 0
      %p125 = por %p123, %p124
      %p126 = scmp.ne.s32.totalorder %s118, %s120
      %p127 = scmp.eq.s32.totalorder %s19, 1
      %p128 = por %p126, %p127
      %p129 = scmp.ne.s32.totalorder %s120, %s121
      %p130 = scmp.eq.s32.totalorder %s19, 0
      %p131 = por %p129, %p130
      %p132 = scmp.ne.s32.totalorder %s120, %s121
      %p133 = scmp.eq.s32.totalorder %s20, 1
      %p134 = por %p132, %p133
      %p136 = scmp.ne.s32.totalorder %s121, %s135
      %p137 = scmp.eq.s32.totalorder %s20, 0
      %p138 = por %p136, %p137
      %s140 = sadd.s32 %s139, 1
      %p143 = scmp.eq.s32.totalorder %s14, 1
      %p144 = scmp.ne.s32.totalorder %s139, %s141
      %p145 = scmp.eq.s32.totalorder %s14, 0
      %p146 = por %p144, %p145
      %p147 = scmp.ne.s32.totalorder %s139, %s141
      %p148 = scmp.eq.s32.totalorder %s19, 1
      %p149 = por %p147, %p148
      %p150 = scmp.ne.s32.totalorder %s141, %s142
      %p151 = scmp.eq.s32.totalorder %s19, 0
      %p152 = por %p150, %p151
      %p153 = scmp.ne.s32.totalorder %s141, %s142
      %p154 = scmp.eq.s32.totalorder %s20, 1
      %p155 = por %p153, %p154
      %p157 = scmp.ne.s32.totalorder %s142, %s156
      %p158 = scmp.eq.s32.totalorder %s20, 0
      %p159 = por %p157, %p158
      %s160 = ssub.s32 %s21, %s33
      %s161 = ssub.s32 %s22, %s29
      %s162 = sor.u32 %s160, %s161
      %p163 = scmp.eq.s32.totalorder %s162, 0
      %s165 = sadd.s32 %s164, 1
      %s166 = scalar_select %p163, %s164, %s165
      %p169 = pneg %p163
      %p170 = scmp.eq.s32.totalorder %s14, 1
      %p171 = por %p169, %p170
      %p172 = scmp.ne.s32.totalorder %s164, %s167
      %p173 = scmp.eq.s32.totalorder %s14, 0
      %p174 = por %p172, %p173
      %p175 = scmp.ne.s32.totalorder %s164, %s167
      %p176 = scmp.eq.s32.totalorder %s19, 1
      %p177 = por %p175, %p176
      %p178 = scmp.ne.s32.totalorder %s167, %s168
      %p179 = scmp.eq.s32.totalorder %s19, 0
      %p180 = por %p178, %p179
      %p181 = scmp.ne.s32.totalorder %s167, %s168
      %p182 = scmp.eq.s32.totalorder %s20, 1
      %p183 = por %p181, %p182
      %p185 = scmp.ne.s32.totalorder %s168, %s184
      %p186 = scmp.eq.s32.totalorder %s20, 0
      %p187 = por %p185, %p186
      %p188 = scmp.le.s32.totalorder 1, %s14
      %p189 = scmp.lt.s32.totalorder %s14, 3
      %p190 = pnand %p188, %p189
      %p191 = pneg %p190
      // Predicated region
      $region9: #{tpu_custom_call.1} parent=5 // pred_check
        _
      $region10: #{tpu_custom_call.1} parent=5 // pred_check_branch
        %193 = sbr.rel (%p190) target = $region12
      $region11: #{tpu_custom_call.1} parent=5 // pred_region
        %s194 = ssub.s32 %s14, 1
        // Predicated region
        $region13: #{tpu_custom_call.1} parent=11 // pred_check
          %p195 = pneg %p131
        $region14: #{tpu_custom_call.1} parent=11 // pred_check_branch
          %197 = sbr.rel (%p195) target = $region16
        $region15: #{tpu_custom_call.1} parent=11 // pred_region
          _
        $region16: #{tpu_custom_call.1} parent=11 // pred_fallthru
          _
        // Predicated region
        $region17: #{tpu_custom_call.1} parent=11 // pred_check
          %p198 = pneg %p152
        $region18: #{tpu_custom_call.1} parent=11 // pred_check_branch
          %200 = sbr.rel (%p198) target = $region20
        $region19: #{tpu_custom_call.1} parent=11 // pred_region
          _
        $region20: #{tpu_custom_call.1} parent=11 // pred_fallthru
          _
      $region12: #{tpu_custom_call.1} parent=5 // pred_fallthru
        _
      %p201 = scmp.lt.s32.totalorder %s14, 2
      // Predicated region
      $region21: #{tpu_custom_call.1} parent=5 // pred_check
        %p202 = pneg %p201
      $region22: #{tpu_custom_call.1} parent=5 // pred_check_branch
        %204 = sbr.rel (%p202) target = $region24
      $region23: #{tpu_custom_call.1} parent=5 // pred_region
        // Predicated region
        $region25: #{tpu_custom_call.1} parent=23 // pred_check
          %p205 = pneg %p48
        $region26: #{tpu_custom_call.1} parent=23 // pred_check_branch
          %207 = sbr.rel (%p205) target = $region28
        $region27: #{tpu_custom_call.1} parent=23 // pred_region
          %p208 = scmp.lt.s32.totalorder %s21, 1
          %s209 = scalar_select %p208, %s21, 1
          %p210 = scmp.lt.s32.totalorder %s22, 0
          %s211 = scalar_select %p210, %s22, 0
          %s212 = sadd.s32 %s211, %s209
          %s213 = smul.addr %s212, 8
          %s214 = scalar_lea.vmem %s0, %s213
        $region28: #{tpu_custom_call.1} parent=23 // pred_fallthru
          _
        // Predicated region
        $region29: #{tpu_custom_call.1} parent=23 // pred_check
          %p215 = pneg %p76
        $region30: #{tpu_custom_call.1} parent=23 // pred_check_branch
          %217 = sbr.rel (%p215) target = $region32
        $region31: #{tpu_custom_call.1} parent=23 // pred_region
          %p218 = scmp.lt.s32.totalorder %s21, 1
          %s219 = scalar_select %p218, %s21, 1
          %p220 = scmp.lt.s32.totalorder %s22, 0
          %s221 = scalar_select %p220, %s22, 0
          %s222 = sadd.s32 %s221, %s219
          %s223 = smul.addr %s222, 8
          %s224 = scalar_lea.vmem %s1, %s223
        $region32: #{tpu_custom_call.1} parent=23 // pred_fallthru
          _
        // Predicated region
        $region33: #{tpu_custom_call.1} parent=23 // pred_check
          %p225 = pneg %p104
        $region34: #{tpu_custom_call.1} parent=23 // pred_check_branch
          %227 = sbr.rel (%p225) target = $region36
        $region35: #{tpu_custom_call.1} parent=23 // pred_region
          %p228 = scmp.lt.s32.totalorder %s21, 1
          %s229 = scalar_select %p228, %s21, 1
          %p230 = scmp.lt.s32.totalorder %s22, 0
          %s231 = scalar_select %p230, %s22, 0
          %s232 = sadd.s32 %s231, %s229
          %s233 = smul.addr %s232, 8
          %s234 = scalar_lea.vmem %s2, %s233
        $region36: #{tpu_custom_call.1} parent=23 // pred_fallthru
          _
      $region24: #{tpu_custom_call.1} parent=5 // pred_fallthru
        _
      %p235 = scmp.le.s32.totalorder 1, %s14
      %p236 = scmp.lt.s32.totalorder %s14, 3
      %p237 = pnand %p235, %p236
      %p238 = pneg %p237
      // Predicated region
      $region37: #{tpu_custom_call.1} parent=5 // pred_check
        _
      $region38: #{tpu_custom_call.1} parent=5 // pred_check_branch
        %240 = sbr.rel (%p237) target = $region40
      $region39: #{tpu_custom_call.1} parent=5 // pred_region
        %s241 = ssub.s32 %s14, 1
        %p242 = scmp.lt.s32.totalorder %s23, 1
        %s243 = scalar_select %p242, %s23, 1
        %p244 = scmp.lt.s32.totalorder %s24, 0
        %s245 = scalar_select %p244, %s24, 0
        %s246 = sadd.s32 %s245, %s243
        %s247 = smul.addr %s246, 8
        %s248 = scalar_lea.vmem %s0, %s247
        %p249 = pneg %p54
        %p250 = pneg %p51
        %p251 = scmp.lt.s32.totalorder %s23, 1
        %s252 = scalar_select %p251, %s23, 1
        %p253 = scmp.lt.s32.totalorder %s24, 0
        %s254 = scalar_select %p253, %s24, 0
        %s255 = sadd.s32 %s254, %s252
        %s256 = smul.addr %s255, 8
        %s257 = scalar_lea.vmem %s1, %s256
        %p258 = pneg %p82
        %p259 = pneg %p79
        %p260 = scmp.lt.s32.totalorder %s23, 1
        %s261 = scalar_select %p260, %s23, 1
        %p262 = scmp.lt.s32.totalorder %s24, 0
        %s263 = scalar_select %p262, %s24, 0
        %s264 = sadd.s32 %s263, %s261
        %s265 = smul.addr %s264, 8
        %s266 = scalar_lea.vmem %s2, %s265
        %p267 = pneg %p110
        %p268 = pneg %p107
        %p269 = pneg %p131
        %p270 = pneg %p128
        %p271 = pneg %p152
        %p272 = pneg %p149
        %p273 = pneg %p180
        %p274 = pneg %p177
        %s275 = sand.u32 %s167, 1
        %s276 = scalar_lea.sflag [#allocation3], %s275
        %s277 = sand.u32 %s167, 1
        %s278 = smul.addr %s277, 8
        %s279 = scalar_lea.vmem [#allocation2], %s278
        %p280 = scmp.lt.s32.totalorder %s23, 1
        %s281 = scalar_select %p280, %s23, 1
        %p282 = scmp.lt.s32.totalorder %s24, 0
        %s283 = scalar_select %p282, %s24, 0
        %s284 = sadd.s32 %s283, %s281
        %s285 = smul.addr %s284, 8
        %s286 = scalar_lea.vmem %s0, %s285
        %p287 = scmp.lt.s32.totalorder %s23, 1
        %s288 = scalar_select %p287, %s23, 1
        %p289 = scmp.lt.s32.totalorder %s24, 0
        %s290 = scalar_select %p289, %s24, 0
        %s291 = sadd.s32 %s290, %s288
        %s292 = smul.addr %s291, 8
        %s293 = scalar_lea.vmem %s1, %s292
        %p294 = scmp.lt.s32.totalorder %s23, 1
        %s295 = scalar_select %p294, %s23, 1
        %p296 = scmp.lt.s32.totalorder %s24, 0
        %s297 = scalar_select %p296, %s24, 0
        %s298 = sadd.s32 %s297, %s295
        %s299 = smul.addr %s298, 8
        %s300 = scalar_lea.vmem %s2, %s299
        %v302 = vld [vmem:[%s286] sm:$0xff]
        %v303 = vlaneseq
        %v304 = vand.u32 %v303, 127
        %vm305 = vcmp.eq.s32.totalorder %v304, 0
        %v306 = vld [vmem:[%s293] sm:$0xff]
        %307 = vrot.lane.b32.xlu0 %v302, 1
        %v308 = vpop.permute.xlu0 %307
        %310 = vset.pattern.permute.xlu0 0
        %311 = vperm.xlu0 %310, %v306
        %v312 = vpop.permute.xlu0 %311
        %v314 = vsel %vm305, %v312, %v308
        %vm315 = vcmp.eq.s32.totalorder %v304, 127
        %v316 = vld [vmem:[%s300] sm:$0xff]
        %317 = vrot.lane.b32.xlu0 %v302, 127
        %v318 = vpop.permute.xlu0 %317
        %320 = vset.pattern.permute.xlu0 0
        %321 = vperm.xlu0 %320, %v316
        %v322 = vpop.permute.xlu0 %321
        %v324 = vsel %vm315, %v322, %v318
        %v325 = vpack.c.bf16 %v302, %v314
        %v326 = vpack.c.bf16 %v324, %v324
        %v327 = vld [vmem:[%s3] sm:$0xf]
        %vm328 = vcmask 195584
        %v330 = vsel %vm328, %v327, 0
        %vm332 = vcmask 1043456
        %v334 = vsel %vm332, %v326, 0
        %336 = vmatprep.subr.bf16.mxu0 0
        %337 = vmatpush1.bf16.msra.mxu0 %v325
        %338 = vmatprep.subr.bf16.mxu0 0
        %339 = vmatpush1.bf16.msra.mxu0 %v334
        %340 = vmatprep.subr.bf16.mxu0 0
        %341 = vmatpush1.bf16.msra.mxu0 0
        %342 = vmatprep.subr.bf16.mxu0 0
        %343 = vmatpush1.bf16.msra.mxu0 0
        %344 = vmatprep.subr.bf16.mxu0 0
        %345 = vmatpush1.bf16.msra.mxu0 0
        %346 = vmatprep.subr.bf16.mxu0 0
        %347 = vmatpush1.bf16.msra.mxu0 0
        %348 = vmatprep.subr.bf16.mxu0 0
        %349 = vmatpush1.bf16.msra.mxu0 0
        %350 = vmatprep.subr.bf16.mxu0 0
        %351 = vmatpush1.bf16.msra.mxu0 0
        %352 = vmatprep.subr.bf16.mxu0 0
        %353 = vmatpush1.bf16.msra.mxu0 0
        %354 = vmatprep.subr.bf16.mxu0 0
        %355 = vmatpush1.bf16.msra.mxu0 0
        %356 = vmatprep.subr.bf16.mxu0 0
        %357 = vmatpush1.bf16.msra.mxu0 0
        %358 = vmatprep.subr.bf16.mxu0 0
        %359 = vmatpush1.bf16.msra.mxu0 0
        %360 = vmatprep.subr.bf16.mxu0 0
        %361 = vmatpush1.bf16.msra.mxu0 0
        %362 = vmatprep.subr.bf16.mxu0 0
        %363 = vmatpush1.bf16.msra.mxu0 0
        %364 = vmatprep.subr.bf16.mxu0 0
        %365 = vmatpush1.bf16.msra.mxu0 0
        %366 = vmatprep.subr.bf16.mxu0 0
        %367 = vmatpush1.bf16.msra.mxu0 0
        %368 = vmatprep.mubr.bf16.mxu0 0
        %369 = vmatmul.mubr.bf16.gmra.mrb[0].mxu0 %v330
        %v370 = vpop.f32.mrb[0].mxu0
        %v371 = vadd.f32 0.0, %v370
        %v372 = vpop.f32.mrb[0].mxu0
        %v373 = vpop.f32.mrb[0].mxu0
        %v374 = vpop.f32.mrb[0].mxu0
        %375 = vdwg.mxu0
        %v376 = vadd.f32 %v302, %v371
        %v377 = vld [vmem:[%s4] sm:$0xff]
        %379 = vset.pattern.permute.xlu0 0
        %380 = vperm.xlu0 %379, %v377
        %v381 = vpop.permute.xlu0 %380
        %v383 = vadd.f32 %v376, %v381
        %v384 = vmax.f32 %v383, 0.0
        %385 = vst [vmem:[%s279] sm:$0xff] %v384
        %s386 = sand.u32 %s167, 1
        %s387 = scalar_lea.sflag [#allocation3], %s386
        %s388 = sand.u32 %s167, 1
        %s389 = smul.addr %s388, 8
        %s390 = scalar_lea.vmem [#allocation2], %s389
        // Predicated region
        $region41: #{tpu_custom_call.1} parent=39 // pred_check
          %p391 = pneg %p177
        $region42: #{tpu_custom_call.1} parent=39 // pred_check_branch
          %393 = sbr.rel (%p391) target = $region44
        $region43: #{tpu_custom_call.1} parent=39 // pred_region
          %s395 = ssub.s32 128, 128
          %396 = vsyncadd %s387, %s395
          %s397 = sadd.s32 %s24, %s23
          %s398 = smul.addr %s397, 128
          %s399 = scalar_lea.hbm %s5, %s398
          %s401 = sshll.u32 %s390, 4
          %s402 = int_to_ptr.vmem [resolvable:$true] %s401
          %404 = dma.vmem_to_hbm [thread:$0]  %s402, 128, %s399, %s387
        $region44: #{tpu_custom_call.1} parent=39 // pred_fallthru
          _
      $region40: #{tpu_custom_call.1} parent=5 // pred_fallthru
        _
      %p405 = scmp.le.s32.totalorder 2, %s14
      // Predicated region
      $region45: #{tpu_custom_call.1} parent=5 // pred_check
        %p406 = pneg %p405
      $region46: #{tpu_custom_call.1} parent=5 // pred_check_branch
        %408 = sbr.rel (%p406) target = $region48
      $region47: #{tpu_custom_call.1} parent=5 // pred_region
        %s409 = ssub.s32 %s14, 2
        // Predicated region
        $region49: #{tpu_custom_call.1} parent=47 // pred_check
          %p410 = pneg %p183
        $region50: #{tpu_custom_call.1} parent=47 // pred_check_branch
          %412 = sbr.rel (%p410) target = $region52
        $region51: #{tpu_custom_call.1} parent=47 // pred_region
          %s413 = sand.u32 %s168, 1
          %s414 = scalar_lea.sflag [#allocation3], %s413
          %s415 = sand.u32 %s168, 1
          %s416 = smul.addr %s415, 8
          %s417 = scalar_lea.vmem [#allocation2], %s416
          %418 = dma.done %s414, 128
        $region52: #{tpu_custom_call.1} parent=47 // pred_fallthru
          _
      $region48: #{tpu_custom_call.1} parent=5 // pred_fallthru
        _
    $region6: #{tpu_custom_call.1} parent=1 // loop_footer
      %s18 = sadd.s32 1, %s14
    $region7: #{tpu_custom_call.1} parent=1 // loop_footer_branch
      %13 = sbr.rel target = $region3
    $region8: #{tpu_custom_call.1} parent=1 // loop_exit
      _
    %419 = vsyncpa [#allocation3], 1
    %s420 = scalar_lea.sflag [#allocation3], 1
    %421 = vsyncpa %s420, 1

</llo_original>
